<compile_context>
chip_gen: v5e
topology: v5e:2x2
jax: 0.10.0
libtpu: 0.0.40
codegen_flags: <defaults>
</compile_context>

<pallas_src>
import functools

import jax
import jax.numpy as jnp
from jax.experimental import pallas as pl
from jax.experimental.pallas import tpu as pltpu


def _leaky_relu(x, slope=0.1):
    # For 0 < slope < 1: max(x, slope*x) == LeakyReLU(x).  Single VPU max.
    return jnp.maximum(x, slope * x)


def decoder_kernel(x_ref, w1_ref, b1_ref, w2_ref, b2_ref, w3_ref, b3_ref, o_ref):
    x = x_ref[...]                                   # (TB, 4)  f32

    # Layer 1: Linear(4, 16).  Tiny K; plain MXU dot (no lane-broadcast VPU
    # path - avoids relayout work on the narrow (TB,4) tile).
    h1 = jnp.dot(x, w1_ref[...], preferred_element_type=jnp.float32) + b1_ref[...]
    h1 = _leaky_relu(h1)                             # f32

    # Layer 2: Linear(16, 64).  MXU in w2's dtype (bf16 when enabled),
    # f32 accumulation; bias add + LeakyReLU in f32.
    h2 = jnp.dot(h1.astype(w2_ref.dtype), w2_ref[...],
                 preferred_element_type=jnp.float32) + b2_ref[...]
    h2 = _leaky_relu(h2)                             # f32

    # Layer 3: Linear(64, 224) - the dominant matmul.  Same dtype policy;
    # cast only at the store (out_dtype may be bf16 for half writeback bytes).
    y = jnp.dot(h2.astype(w3_ref.dtype), w3_ref[...],
                preferred_element_type=jnp.float32) + b3_ref[...]
    o_ref[...] = y.astype(o_ref.dtype)


def _round_up(n, m):
    return ((n + m - 1) // m) * m


@functools.partial(jax.jit,
                   static_argnames=("block_b", "out_dtype", "mxu_dtype"))
def decoder_net_forward(x, params, *, block_b=4096,
                        out_dtype=jnp.float32, mxu_dtype=jnp.float32):
    """x: [B, 4] float32. params: dict of weights/biases. Returns [B, 224]."""
    w1, b1 = params["w1"], params["b1"]
    w2, b2 = params["w2"], params["b2"]
    w3, b3 = params["w3"], params["b3"]
    if mxu_dtype != jnp.float32:
        # Cast MXU operands once in the wrapper (weights are tiny); biases,
        # layer-1 weight and all VPU work stay f32 (v5e has no bf16 VPU).
        w2 = w2.astype(mxu_dtype)
        w3 = w3.astype(mxu_dtype)

    B = x.shape[0]
    # Batch tile: multiple of 8 (dense sublanes); footprint independent of B.
    tb = min(block_b, _round_up(B, 8))
    grid = (pl.cdiv(B, tb),)

    # Explicit VMEM budget: double-buffered in/out tiles + intermediates +
    # resident weights, with headroom.  Prevents the compiler from rejecting
    # or silently shrinking the larger tiles (scoped defaults are only
    # 16 MiB on v5e / 32 MiB on v6e+v7x).
    out_bytes = tb * 224 * jnp.dtype(out_dtype).itemsize
    in_bytes = tb * 4 * 4
    inter_bytes = tb * (16 + 64 + 224) * 4            # h1, h2, pre-store acc
    weight_bytes = (4 * 16 + 16 + 16 * 64 + 64 + 64 * 224 + 224) * 4
    vmem_limit = int(2 * (out_bytes + in_bytes) + inter_bytes + weight_bytes
                     + (8 << 20))
    vmem_limit = min(vmem_limit, 96 << 20)

    # Weights/biases: full-extent blocks with constant block index -> resident
    # in VMEM across all grid steps (no per-tile re-DMA).
    def resident(a):
        nd = a.ndim
        return pl.BlockSpec(a.shape, lambda i, _nd=nd: (0,) * _nd)

    return pl.pallas_call(
        decoder_kernel,
        grid=grid,
        out_shape=jax.ShapeDtypeStruct((B, 224), out_dtype),
        in_specs=[
            pl.BlockSpec((tb, 4), lambda i: (i, 0)),
            resident(w1), resident(b1),
            resident(w2), resident(b2),
            resident(w3), resident(b3),
        ],
        out_specs=pl.BlockSpec((tb, 224), lambda i: (i, 0)),
        compiler_params=pltpu.CompilerParams(
            dimension_semantics=("parallel",),   # v7x: shard batch over 2 TCs
            vmem_limit_bytes=vmem_limit),
    )(x, w1, b1, w2, b2, w3, b3)


def init_params(key):
    """Deterministic init mimicking PyTorch Linear's U(-1/sqrt(fan_in), +)."""
    dims = [(4, 16), (16, 64), (64, 224)]
    params = {}
    keys = jax.random.split(key, 2 * len(dims))
    for i, (fan_in, fan_out) in enumerate(dims):
        bound = 1.0 / jnp.sqrt(fan_in)
        params[f"w{i+1}"] = jax.random.uniform(
            keys[2 * i], (fan_in, fan_out), jnp.float32, -bound, bound)
        params[f"b{i+1}"] = jax.random.uniform(
            keys[2 * i + 1], (1, fan_out), jnp.float32, -bound, bound)
    return params


def reference_forward(x, params):
    hp = jax.lax.Precision.HIGHEST
    h = jnp.dot(x, params["w1"], precision=hp) + params["b1"]
    h = jnp.where(h > 0, h, 0.1 * h)
    h = jnp.dot(h, params["w2"], precision=hp) + params["b2"]
    h = jnp.where(h > 0, h, 0.1 * h)
    return jnp.dot(h, params["w3"], precision=hp) + params["b3"]


if __name__ == "__main__":
    key = jax.random.PRNGKey(0)
    k_params, k_x = jax.random.split(key)
    params = init_params(k_params)

    # Small-shape test consistent with the module: batch=8, features=4.
    # f32 MXU operands + f32 output -> bit-compatible with the PyTorch module.
    x = jax.random.normal(k_x, (8, 4), jnp.float32)
    out = jax.block_until_ready(decoder_net_forward(x, params))
    ref = reference_forward(x, params)
    assert out.shape == (8, 224), out.shape
    assert jnp.allclose(out, ref, atol=1e-5, rtol=1e-5), "mismatch vs reference"

    # Multi-tile path with a ragged remainder block (exercises grid pipelining
    # and Pallas edge-block masking on the last batch tile).
    x_big = jax.random.normal(jax.random.PRNGKey(1), (200, 4), jnp.float32)
    out_big = jax.block_until_ready(
        decoder_net_forward(x_big, params, block_b=64))
    ref_big = reference_forward(x_big, params)
    assert out_big.shape == (200, 224), out_big.shape
    assert jnp.allclose(out_big, ref_big, atol=1e-5, rtol=1e-5), "mismatch (tiled)"

    # Fast path: bf16 MXU operands on layers 2/3 + bf16 writeback (accuracy-
    # policy choice per review; f32 accumulation kept inside the kernel).
    out_fast = jax.block_until_ready(
        decoder_net_forward(x_big, params, block_b=64,
                            mxu_dtype=jnp.bfloat16, out_dtype=jnp.bfloat16))
    assert out_fast.shape == (200, 224), out_fast.shape
    assert out_fast.dtype == jnp.bfloat16
    assert jnp.allclose(out_fast.astype(jnp.float32), ref_big,
                        atol=5e-2, rtol=5e-2), "mismatch (bf16 fast path)"

    print("KERNEL_OK")
</pallas_src>

<mosaic_0001>
module attributes {stable_mosaic.version = 11 : i64} {
  func.func @decoder_kernel(%arg0: i32, %arg1: memref<8x4xf32, #tpu.memory_space<vmem>>, %arg2: memref<4x16xf32, #tpu.memory_space<vmem>>, %arg3: memref<1x16xf32, #tpu.memory_space<vmem>>, %arg4: memref<16x64xf32, #tpu.memory_space<vmem>>, %arg5: memref<1x64xf32, #tpu.memory_space<vmem>>, %arg6: memref<64x224xf32, #tpu.memory_space<vmem>>, %arg7: memref<1x224xf32, #tpu.memory_space<vmem>>, %arg8: memref<8x224xf32, #tpu.memory_space<vmem>>) attributes {dimension_semantics = [#tpu.dimension_semantics<parallel>], iteration_bounds = array<i64: 1>, scalar_prefetch = 0 : i64, scratch_operands = 0 : i64, tpu.core_type = #tpu.core_type<tc>, window_params = [{transform_indices = @transform_0, window_bounds = array<i64: 8, 4>}, {pipeline_mode = #tpu.pipeline_mode<synchronous>, transform_indices = @transform_1, window_bounds = array<i64: 4, 16>}, {pipeline_mode = #tpu.pipeline_mode<synchronous>, transform_indices = @transform_2, window_bounds = array<i64: 1, 16>}, {pipeline_mode = #tpu.pipeline_mode<synchronous>, transform_indices = @transform_3, window_bounds = array<i64: 16, 64>}, {pipeline_mode = #tpu.pipeline_mode<synchronous>, transform_indices = @transform_4, window_bounds = array<i64: 1, 64>}, {pipeline_mode = #tpu.pipeline_mode<synchronous>, transform_indices = @transform_5, window_bounds = array<i64: 64, 224>}, {pipeline_mode = #tpu.pipeline_mode<synchronous>, transform_indices = @transform_6, window_bounds = array<i64: 1, 224>}, {transform_indices = @transform_7, window_bounds = array<i64: 8, 224>}]} {
    %c0 = arith.constant 0 : index
    %c0_0 = arith.constant 0 : index
    %0 = vector.load %arg1[%c0, %c0_0] : memref<8x4xf32, #tpu.memory_space<vmem>>, vector<8x4xf32>
    %c0_1 = arith.constant 0 : index
    %c0_2 = arith.constant 0 : index
    %1 = vector.load %arg2[%c0_1, %c0_2] : memref<4x16xf32, #tpu.memory_space<vmem>>, vector<4x16xf32>
    %cst = arith.constant dense<0.000000e+00> : vector<8x16xf32>
    %2 = tpu.matmul %0, %1, %cst {dimension_numbers = #tpu.dot_dimension_numbers<[1], [0], [0], [1], [0, 0, 1, 1], [], []>} : vector<8x4xf32>, vector<4x16xf32>, vector<8x16xf32> -> vector<8x16xf32>
    %c0_3 = arith.constant 0 : index
    %c0_4 = arith.constant 0 : index
    %3 = vector.load %arg3[%c0_3, %c0_4] : memref<1x16xf32, #tpu.memory_space<vmem>>, vector<1x16xf32>
    %4 = vector.broadcast %3 : vector<1x16xf32> to vector<8x16xf32>
    %5 = arith.addf %2, %4 : vector<8x16xf32>
    %cst_5 = arith.constant 1.000000e-01 : f32
    %6 = vector.broadcast %cst_5 : f32 to vector<8x16xf32>
    %7 = arith.mulf %6, %5 : vector<8x16xf32>
    %8 = arith.maximumf %5, %7 : vector<8x16xf32>
    %c0_6 = arith.constant 0 : index
    %c0_7 = arith.constant 0 : index
    %9 = vector.load %arg4[%c0_6, %c0_7] : memref<16x64xf32, #tpu.memory_space<vmem>>, vector<16x64xf32>
    %cst_8 = arith.constant dense<0.000000e+00> : vector<8x64xf32>
    %10 = tpu.matmul %8, %9, %cst_8 {dimension_numbers = #tpu.dot_dimension_numbers<[1], [0], [0], [1], [0, 0, 1, 1], [], []>} : vector<8x16xf32>, vector<16x64xf32>, vector<8x64xf32> -> vector<8x64xf32>
    %c0_9 = arith.constant 0 : index
    %c0_10 = arith.constant 0 : index
    %11 = vector.load %arg5[%c0_9, %c0_10] : memref<1x64xf32, #tpu.memory_space<vmem>>, vector<1x64xf32>
    %12 = vector.broadcast %11 : vector<1x64xf32> to vector<8x64xf32>
    %13 = arith.addf %10, %12 : vector<8x64xf32>
    %cst_11 = arith.constant 1.000000e-01 : f32
    %14 = vector.broadcast %cst_11 : f32 to vector<8x64xf32>
    %15 = arith.mulf %14, %13 : vector<8x64xf32>
    %16 = arith.maximumf %13, %15 : vector<8x64xf32>
    %c0_12 = arith.constant 0 : index
    %c0_13 = arith.constant 0 : index
    %17 = vector.load %arg6[%c0_12, %c0_13] : memref<64x224xf32, #tpu.memory_space<vmem>>, vector<64x224xf32>
    %cst_14 = arith.constant dense<0.000000e+00> : vector<8x224xf32>
    %18 = tpu.matmul %16, %17, %cst_14 {dimension_numbers = #tpu.dot_dimension_numbers<[1], [0], [0], [1], [0, 0, 1, 1], [], []>} : vector<8x64xf32>, vector<64x224xf32>, vector<8x224xf32> -> vector<8x224xf32>
    %c0_15 = arith.constant 0 : index
    %c0_16 = arith.constant 0 : index
    %19 = vector.load %arg7[%c0_15, %c0_16] : memref<1x224xf32, #tpu.memory_space<vmem>>, vector<1x224xf32>
    %20 = vector.broadcast %19 : vector<1x224xf32> to vector<8x224xf32>
    %21 = arith.addf %18, %20 : vector<8x224xf32>
    %c0_17 = arith.constant 0 : index
    %c0_18 = arith.constant 0 : index
    %22 = vector.load %arg8[%c0_17, %c0_18] : memref<8x224xf32, #tpu.memory_space<vmem>>, vector<8x224xf32>
    tpu.vector_store %arg8[%c0_17, %c0_18], %21 {strides = array<i32>} : memref<8x224xf32, #tpu.memory_space<vmem>>, vector<8x224xf32>,
    return
  }
  func.func @transform_0(%arg0: i32) -> (i32, i32) {
    %c0_i32 = arith.constant 0 : i32
    %c0_i32_0 = arith.constant 0 : i32
    return %arg0, %c0_i32 : i32, i32
  }
  func.func @transform_1(%arg0: i32) -> (i32, i32) {
    %c0_i32 = arith.constant 0 : i32
    %c0_i32_0 = arith.constant 0 : i32
    %c0_i32_1 = arith.constant 0 : i32
    return %c0_i32, %c0_i32_0 : i32, i32
  }
  func.func @transform_2(%arg0: i32) -> (i32, i32) {
    %c0_i32 = arith.constant 0 : i32
    %c0_i32_0 = arith.constant 0 : i32
    %c0_i32_1 = arith.constant 0 : i32
    return %c0_i32, %c0_i32_0 : i32, i32
  }
  func.func @transform_3(%arg0: i32) -> (i32, i32) {
    %c0_i32 = arith.constant 0 : i32
    %c0_i32_0 = arith.constant 0 : i32
    %c0_i32_1 = arith.constant 0 : i32
    return %c0_i32, %c0_i32_0 : i32, i32
  }
  func.func @transform_4(%arg0: i32) -> (i32, i32) {
    %c0_i32 = arith.constant 0 : i32
    %c0_i32_0 = arith.constant 0 : i32
    %c0_i32_1 = arith.constant 0 : i32
    return %c0_i32, %c0_i32_0 : i32, i32
  }
  func.func @transform_5(%arg0: i32) -> (i32, i32) {
    %c0_i32 = arith.constant 0 : i32
    %c0_i32_0 = arith.constant 0 : i32
    %c0_i32_1 = arith.constant 0 : i32
    return %c0_i32, %c0_i32_0 : i32, i32
  }
  func.func @transform_6(%arg0: i32) -> (i32, i32) {
    %c0_i32 = arith.constant 0 : i32
    %c0_i32_0 = arith.constant 0 : i32
    %c0_i32_1 = arith.constant 0 : i32
    return %c0_i32, %c0_i32_0 : i32, i32
  }
  func.func @transform_7(%arg0: i32) -> (i32, i32) {
    %c0_i32 = arith.constant 0 : i32
    %c0_i32_0 = arith.constant 0 : i32
    return %arg0, %c0_i32 : i32, i32
  }
}

</mosaic_0001>

<llo_original>
// kernel: decoder_net_forward.1
$region0: #{decoder_net_forward.1}
  #allocation0 [shape = 'u32[]', space=smem, size = 0x4, offset = 0x4, fixed_abs, tag = 'smem constant byte address 0x4 - core index']
  #allocation1 [shape = 'u32[72,128]{1,0:T(1,128)}', space=vmem, size = 0x9000, scoped, tag = 'internal scratch']
  %s0 = inlined_call_operand.vmem [shape: f32[8,4], index: 0, kind: input, shape index: {}]
  %s1 = inlined_call_operand.hbm [shape: f32[4,16], index: 1, kind: input, shape index: {}]
  %s2 = inlined_call_operand.hbm [shape: f32[1,16], index: 2, kind: input, shape index: {}]
  %s3 = inlined_call_operand.vmem [shape: f32[16,64], index: 3, kind: input, shape index: {}]
  %s4 = inlined_call_operand.hbm [shape: f32[1,64], index: 4, kind: input, shape index: {}]
  %s5 = inlined_call_operand.hbm [shape: f32[64,224], index: 5, kind: input, shape index: {}]
  %s6 = inlined_call_operand.hbm [shape: f32[1,224], index: 6, kind: input, shape index: {}]
  %s7 = inlined_call_operand.hbm [shape: f32[8,224], index: 7, kind: output, shape index: {}]
  %s8 = sld [smem:[#allocation0]]
  $region58: #{decoder_net_forward.1} parent=0
    _
  %s10 = ssub.s32 1, %s8
  %s11 = scalar_select 0, %s10, %s8
  $region1: #{decoder_net_forward.1} parent=0
    #allocation2 [shape = 'u8[2048]{0}', space=vmem, size = 0x800, scoped, tag = 'input window, operand 1, single buffered']
    #allocation3 [shape = 's32[1]{0}', space=sflag, size = 0x4, scoped, tag = 'scoped memory for decoder_net_forward.1']
    #allocation4 [shape = 's32[1]{0}', space=sflag, size = 0x4, scoped, tag = 'scoped memory for decoder_net_forward.1']
    #allocation5 [shape = 'u8[512]{0}', space=vmem, size = 0x400, scoped, tag = 'input window, operand 2, single buffered']
    #allocation6 [shape = 's32[1]{0}', space=sflag, size = 0x4, scoped, tag = 'scoped memory for decoder_net_forward.1']
    #allocation7 [shape = 'u8[512]{0}', space=vmem, size = 0x400, scoped, tag = 'input window, operand 4, single buffered']
    #allocation8 [shape = 'u8[65536]{0}', space=vmem, size = 0x10000, scoped, tag = 'input window, operand 5, single buffered']
    #allocation9 [shape = 's32[1]{0}', space=sflag, size = 0x4, scoped, tag = 'scoped memory for decoder_net_forward.1']
    #allocation10 [shape = 'u8[1024]{0}', space=vmem, size = 0x400, scoped, tag = 'input window, operand 6, single buffered']
    #allocation11 [shape = 'u8[8192]{0}', space=vmem, size = 0x2000, scoped, tag = 'output window, operand 0, single buffered']
    %12 = vsyncpa [#allocation3], 0
    %13 = vsyncpa [#allocation6], 0
    %14 = vsyncpa [#allocation9], 0
    %15 = vsyncpa [#allocation4], 0
    // Predicated region
    $region2: #{decoder_net_forward.1} parent=1 // pred_check
      _
    $region3: #{decoder_net_forward.1} parent=1 // pred_check_branch
      %17 = sbr.rel (0) target = $region5
    $region4: #{decoder_net_forward.1} parent=1 // pred_region
      _
    $region5: #{decoder_net_forward.1} parent=1 // pred_fallthru
      _
    // Predicated region
    $region6: #{decoder_net_forward.1} parent=1 // pred_check
      _
    $region7: #{decoder_net_forward.1} parent=1 // pred_check_branch
      %19 = sbr.rel (0) target = $region9
    $region8: #{decoder_net_forward.1} parent=1 // pred_region
      %21 = vsyncadd [#allocation3], 0
      %s23 = sshll.u32 %s1, 4
      %s24 = int_to_ptr.hbm [resolvable:$true] %s23
      %s25 = sshll.u32 [#allocation2], 4
      %s26 = int_to_ptr.vmem [resolvable:$true] %s25
      %28 = dma.hbm_to_vmem [thread:$0]  %s24, 64, %s26, [#allocation3]
    $region9: #{decoder_net_forward.1} parent=1 // pred_fallthru
      _
    // Predicated region
    $region10: #{decoder_net_forward.1} parent=1 // pred_check
      _
    $region11: #{decoder_net_forward.1} parent=1 // pred_check_branch
      %30 = sbr.rel (0) target = $region13
    $region12: #{decoder_net_forward.1} parent=1 // pred_region
      %32 = vsyncadd [#allocation6], 0
      %s34 = sshll.u32 %s2, 4
      %s35 = int_to_ptr.hbm [resolvable:$true] %s34
      %s36 = sshll.u32 [#allocation5], 4
      %s37 = int_to_ptr.vmem [resolvable:$true] %s36
      %39 = dma.hbm_to_vmem [thread:$0]  %s35, 16, %s37, [#allocation6]
    $region13: #{decoder_net_forward.1} parent=1 // pred_fallthru
      _
    // Predicated region
    $region14: #{decoder_net_forward.1} parent=1 // pred_check
      _
    $region15: #{decoder_net_forward.1} parent=1 // pred_check_branch
      %41 = sbr.rel (0) target = $region17
    $region16: #{decoder_net_forward.1} parent=1 // pred_region
      _
    $region17: #{decoder_net_forward.1} parent=1 // pred_fallthru
      _
    // Predicated region
    $region18: #{decoder_net_forward.1} parent=1 // pred_check
      _
    $region19: #{decoder_net_forward.1} parent=1 // pred_check_branch
      %43 = sbr.rel (0) target = $region21
    $region20: #{decoder_net_forward.1} parent=1 // pred_region
      %45 = vsyncadd [#allocation6], 0
      %s47 = sshll.u32 %s4, 4
      %s48 = int_to_ptr.hbm [resolvable:$true] %s47
      %s49 = sshll.u32 [#allocation7], 4
      %s50 = int_to_ptr.vmem [resolvable:$true] %s49
      %52 = dma.hbm_to_vmem [thread:$0]  %s48, 16, %s50, [#allocation6]
    $region21: #{decoder_net_forward.1} parent=1 // pred_fallthru
      _
    // Predicated region
    $region22: #{decoder_net_forward.1} parent=1 // pred_check
      _
    $region23: #{decoder_net_forward.1} parent=1 // pred_check_branch
      %54 = sbr.rel (0) target = $region25
    $region24: #{decoder_net_forward.1} parent=1 // pred_region
      %56 = vsyncadd [#allocation9], 0
      %s57 = sshll.u32 %s5, 4
      %s58 = int_to_ptr.hbm [resolvable:$true] %s57
      %s59 = sshll.u32 [#allocation8], 4
      %s60 = int_to_ptr.vmem [resolvable:$true] %s59
      %65 = dma.hbm_to_vmem [thread:$0]  %s58, 2048, %s60, [#allocation9], 256, 256, 16
    $region25: #{decoder_net_forward.1} parent=1 // pred_fallthru
      _
    // Predicated region
    $region26: #{decoder_net_forward.1} parent=1 // pred_check
      _
    $region27: #{decoder_net_forward.1} parent=1 // pred_check_branch
      %67 = sbr.rel (0) target = $region29
    $region28: #{decoder_net_forward.1} parent=1 // pred_region
      %69 = vsyncadd [#allocation9], 0
      %s71 = sshll.u32 %s6, 4
      %s72 = int_to_ptr.hbm [resolvable:$true] %s71
      %s73 = sshll.u32 [#allocation10], 4
      %s74 = int_to_ptr.vmem [resolvable:$true] %s73
      %76 = dma.hbm_to_vmem [thread:$0]  %s72, 32, %s74, [#allocation9]
    $region29: #{decoder_net_forward.1} parent=1 // pred_fallthru
      _
    // Predicated region
    $region30: #{decoder_net_forward.1} parent=1 // pred_check
      _
    $region31: #{decoder_net_forward.1} parent=1 // pred_check_branch
      %78 = sbr.rel (0) target = $region33
    $region32: #{decoder_net_forward.1} parent=1 // pred_region
      %80 = dma.done [#allocation3], 64
    $region33: #{decoder_net_forward.1} parent=1 // pred_fallthru
      _
    // Predicated region
    $region34: #{decoder_net_forward.1} parent=1 // pred_check
      _
    $region35: #{decoder_net_forward.1} parent=1 // pred_check_branch
      %82 = sbr.rel (0) target = $region37
    $region36: #{decoder_net_forward.1} parent=1 // pred_region
      %84 = dma.done [#allocation6], 16
    $region37: #{decoder_net_forward.1} parent=1 // pred_fallthru
      _
    // Predicated region
    $region38: #{decoder_net_forward.1} parent=1 // pred_check
      _
    $region39: #{decoder_net_forward.1} parent=1 // pred_check_branch
      %86 = sbr.rel (0) target = $region41
    $region40: #{decoder_net_forward.1} parent=1 // pred_region
      %88 = dma.done [#allocation6], 16
    $region41: #{decoder_net_forward.1} parent=1 // pred_fallthru
      _
    // Predicated region
    $region42: #{decoder_net_forward.1} parent=1 // pred_check
      _
    $region43: #{decoder_net_forward.1} parent=1 // pred_check_branch
      %90 = sbr.rel (0) target = $region45
    $region44: #{decoder_net_forward.1} parent=1 // pred_region
      %92 = dma.done [#allocation9], 2048
    $region45: #{decoder_net_forward.1} parent=1 // pred_fallthru
      _
    // Predicated region
    $region46: #{decoder_net_forward.1} parent=1 // pred_check
      _
    $region47: #{decoder_net_forward.1} parent=1 // pred_check_branch
      %94 = sbr.rel (0) target = $region49
    $region48: #{decoder_net_forward.1} parent=1 // pred_region
      %96 = dma.done [#allocation9], 32
    $region49: #{decoder_net_forward.1} parent=1 // pred_fallthru
      _
    %v97 = vld [vmem:[%s0] sm:$0xff]
    %v98 = vld [vmem:[#allocation2] sm:$0xf]
    %v99 = vld [vmem:[#allocation5] sm:$0x1]
    %v101 = vperm.slane %v99, 0
    %vm103 = vcmask 31744
    %v105 = vsel %vm103, %v97, 0
    %vm107 = vcmask 1043456
    %v109 = vsel %vm107, %v98, 0
    %111 = vmatpush.msra.mxu0 0.0
    %112 = vmatpush.msra.mxu0 0.0
    %113 = vmatpush.msra.mxu0 0.0
    %114 = vmatpush.msra.mxu0 0.0
    %115 = vmatpush.msra.mxu0 0.0
    %116 = vmatpush.msra.mxu0 0.0
    %117 = vmatpush.msra.mxu0 0.0
    %118 = vmatpush.msra.mxu0 0.0
    %119 = vmatpush.msra.mxu0 0.0
    %120 = vmatpush.msra.mxu0 0.0
    %121 = vmatpush.msra.mxu0 0.0
    %122 = vmatpush.msra.mxu0 0.0
    %123 = vmatpush.msra.mxu0 0.0
    %124 = vmatpush.msra.mxu0 0.0
    %125 = vmatpush.msra.mxu0 0.0
    %126 = vmatpush.msra.mxu0 %v109
    %127 = vmatmul.f32.gmra.mxu0 %v105
    %v128 = vpop.f32.mrf.mxu0
    %v129 = vadd.f32 %v101, %v128
    %130 = vdwg.mxu0
    %v131 = vmul.f32 %v129, 0.1
    %v132 = vmax.f32 %v129, %v131
    %v133 = vld [vmem:[%s3] sm:$0xff]
    %v134 = vld [vmem:[%s3 + $0x8] sm:$0xff]
    %v135 = vld [vmem:[#allocation7] sm:$0x1]
    %v137 = vperm.slane %v135, 0
    %vm139 = vcmask 130048
    %v141 = vsel %vm139, %v132, 0
    %143 = vmatpush.msra.mxu0 0.0
    %144 = vmatpush.msra.mxu0 0.0
    %145 = vmatpush.msra.mxu0 0.0
    %146 = vmatpush.msra.mxu0 0.0
    %147 = vmatpush.msra.mxu0 0.0
    %148 = vmatpush.msra.mxu0 0.0
    %149 = vmatpush.msra.mxu0 0.0
    %150 = vmatpush.msra.mxu0 0.0
    %151 = vmatpush.msra.mxu0 0.0
    %152 = vmatpush.msra.mxu0 0.0
    %153 = vmatpush.msra.mxu0 0.0
    %154 = vmatpush.msra.mxu0 0.0
    %155 = vmatpush.msra.mxu0 0.0
    %156 = vmatpush.msra.mxu0 0.0
    %157 = vmatpush.msra.mxu0 %v134
    %158 = vmatpush.msra.mxu0 %v133
    %159 = vmatmul.f32.gmra.mxu0 %v141
    %v160 = vpop.f32.mrf.mxu0
    %v161 = vadd.f32 %v137, %v160
    %162 = vdwg.mxu0
    %v163 = vmul.f32 %v161, 0.1
    %v164 = vmax.f32 %v161, %v163
    %v165 = vld [vmem:[#allocation8] sm:$0xff]
    %v166 = vld [vmem:[#allocation8 + $0x8] sm:$0xff]
    %v167 = vld [vmem:[#allocation8 + $0x10] sm:$0xff]
    %v168 = vld [vmem:[#allocation8 + $0x18] sm:$0xff]
    %v169 = vld [vmem:[#allocation8 + $0x20] sm:$0xff]
    %v170 = vld [vmem:[#allocation8 + $0x28] sm:$0xff]
    %v171 = vld [vmem:[#allocation8 + $0x30] sm:$0xff]
    %v172 = vld [vmem:[#allocation8 + $0x38] sm:$0xff]
    %v173 = vld [vmem:[#allocation8 + $0x40] sm:$0xff]
    %v174 = vld [vmem:[#allocation8 + $0x48] sm:$0xff]
    %v175 = vld [vmem:[#allocation8 + $0x50] sm:$0xff]
    %v176 = vld [vmem:[#allocation8 + $0x58] sm:$0xff]
    %v177 = vld [vmem:[#allocation8 + $0x60] sm:$0xff]
    %v178 = vld [vmem:[#allocation8 + $0x68] sm:$0xff]
    %v179 = vld [vmem:[#allocation8 + $0x70] sm:$0xff]
    %v180 = vld [vmem:[#allocation8 + $0x78] sm:$0xff]
    %v181 = vld [vmem:[#allocation10] sm:$0x3]
    %v183 = vperm.slane %v181, 0
    %v184 = vperm.slane %v181, 1
    %vm187 = vcmask 523264
    %v189 = vsel %vm187, %v164, 0
    %191 = vmatpush.msra.mxu0 0.0
    %192 = vmatpush.msra.mxu0 0.0
    %193 = vmatpush.msra.mxu0 0.0
    %194 = vmatpush.msra.mxu0 0.0
    %195 = vmatpush.msra.mxu0 0.0
    %196 = vmatpush.msra.mxu0 0.0
    %197 = vmatpush.msra.mxu0 0.0
    %198 = vmatpush.msra.mxu0 0.0
    %199 = vmatpush.msra.mxu0 %v179
    %200 = vmatpush.msra.mxu0 %v177
    %201 = vmatpush.msra.mxu0 %v175
    %202 = vmatpush.msra.mxu0 %v173
    %203 = vmatpush.msra.mxu0 %v171
    %204 = vmatpush.msra.mxu0 %v169
    %205 = vmatpush.msra.mxu0 %v167
    %206 = vmatpush.msra.mxu0 %v165
    %207 = vmatmul.f32.gmra.mxu0 %v189
    %v208 = vpop.f32.mrf.mxu0
    %v209 = vadd.f32 %v183, %v208
    %210 = vdwg.mxu0
    %211 = vmatpush.msra.mxu0 0.0
    %212 = vmatpush.msra.mxu0 0.0
    %213 = vmatpush.msra.mxu0 0.0
    %214 = vmatpush.msra.mxu0 0.0
    %215 = vmatpush.msra.mxu0 0.0
    %216 = vmatpush.msra.mxu0 0.0
    %217 = vmatpush.msra.mxu0 0.0
    %218 = vmatpush.msra.mxu0 0.0
    %219 = vmatpush.msra.mxu0 %v180
    %220 = vmatpush.msra.mxu0 %v178
    %221 = vmatpush.msra.mxu0 %v176
    %222 = vmatpush.msra.mxu0 %v174
    %223 = vmatpush.msra.mxu0 %v172
    %224 = vmatpush.msra.mxu0 %v170
    %225 = vmatpush.msra.mxu0 %v168
    %226 = vmatpush.msra.mxu0 %v166
    %227 = vmatmul.f32.gmra.mxu0 %v189
    %v228 = vpop.f32.mrf.mxu0
    %v229 = vadd.f32 %v184, %v228
    %230 = vdwg.mxu0
    %231 = vst [vmem:[#allocation11] sm:$0xff] %v209
    %vm232 = vcmask 785408
    %233 = vst.msk [vmem:[#allocation11 + $0x8] sm:$0xff] %vm232, %v229
    // Predicated region
    $region50: #{decoder_net_forward.1} parent=1 // pred_check
      _
    $region51: #{decoder_net_forward.1} parent=1 // pred_check_branch
      %235 = sbr.rel (0) target = $region53
    $region52: #{decoder_net_forward.1} parent=1 // pred_region
      %237 = vsyncadd [#allocation4], 0
      %s239 = sshll.u32 [#allocation11], 4
      %s240 = int_to_ptr.vmem [resolvable:$true] %s239
      %s241 = sshll.u32 %s7, 4
      %s242 = int_to_ptr.hbm [resolvable:$true] %s241
      %244 = dma.vmem_to_hbm [thread:$0]  %s240, 256, %s242, [#allocation4]
    $region53: #{decoder_net_forward.1} parent=1 // pred_fallthru
      _
    // Predicated region
    $region54: #{decoder_net_forward.1} parent=1 // pred_check
      _
    $region55: #{decoder_net_forward.1} parent=1 // pred_check_branch
      %246 = sbr.rel (0) target = $region57
    $region56: #{decoder_net_forward.1} parent=1 // pred_region
      %248 = dma.done [#allocation4], 256
    $region57: #{decoder_net_forward.1} parent=1 // pred_fallthru
      _
    %249 = vsyncpa [#allocation3], 1
    %250 = vsyncpa [#allocation6], 1
    %251 = vsyncpa [#allocation9], 1
    %252 = vsyncpa [#allocation4], 1

</llo_original>
